<compile_context>
chip_gen: v7x
topology: tpu7x:2x2x1
jax: 0.10.0
libtpu: 0.0.40
codegen_flags: <defaults>
</compile_context>

<pallas_src>
import functools

import jax
import jax.numpy as jnp
from jax import lax
from jax.experimental import pallas as pl
from jax.experimental.pallas import tpu as pltpu


def _cosface_kernel(labels_ref, logits_ref, out_ref, *, s, m):
    # labels_ref: (tm, 1) int32; logits_ref/out_ref: (tm, tn) float.
    j = pl.program_id(1)
    tn = out_ref.shape[1]
    x = logits_ref[...]
    # Shift the skinny (tm, 1) label vector by this block's column offset
    # instead of adding j*tn to the full (tm, tn) iota.
    lbl = labels_ref[...] - j * tn
    col = lax.broadcasted_iota(jnp.int32, x.shape, 1)
    # labels == -1 ("ignore") can never match a non-negative column index,
    # so no separate `!= -1` term is needed.
    hit = col == lbl
    m_c = jnp.asarray(m, x.dtype)
    s_c = jnp.asarray(s, x.dtype)
    zero = jnp.asarray(0.0, x.dtype)
    # Same formula (and rounding) as the reference: (x - m*onehot) * s.
    out_ref[...] = (x - jnp.where(hit, m_c, zero)) * s_c


def _physical_vmem_bytes():
    """Per-core VMEM capacity; conservative (v7x) fallback if unavailable."""
    try:
        info = pltpu.get_tpu_info()
        v = getattr(info, "vmem_capacity_bytes", None)
        if v:
            return int(v)
    except Exception:
        pass
    return 64 << 20  # v7x per-TC VMEM; safe lower bound on v5e/v6e too.


def _divisors(n):
    ds = set()
    i = 1
    while i * i <= n:
        if n % i == 0:
            ds.add(i)
            ds.add(n // i)
        i += 1
    return ds


def _choose_tiles(N, C, itemsize, budget):
    """Pick (tm, tn): biggest lane-dense block whose double-buffered working
    set (in + out + labels) fits the VMEM budget.  Grid uses cdiv, so tiles
    need not divide (N, C); exact divisors are still preferred (no tail waste).
    """
    # Sublane packing unit per dtype: f32 -> 8 rows/vreg, bf16 -> 16, int8/fp8 -> 32.
    row_mult = {1: 32, 2: 16}.get(itemsize, 8)

    # Row-tile candidates dividing N exactly (multiples of the packing unit).
    n_divs = sorted((d for d in _divisors(N) if d % row_mult == 0), reverse=True)

    # Column-tile preference: full C first (contiguous HBM DMA, labels resident,
    # single column step), then multiples of 128 dividing C, then generic
    # multiples of 128 (tail handled by the cdiv grid + masked writes).
    tn_cands = [C]
    tn_cands += sorted((d for d in _divisors(C) if d % 128 == 0 and d < C),
                       reverse=True)
    generic = []
    v = 128
    while v < C:
        generic.append(v)
        v *= 2
    seen = set(tn_cands)
    tn_cands += [t for t in reversed(generic) if t not in seen]

    def pick_tm(tn):
        # 2x input block + 2x output block + 2x (tm,1) int32 labels (lane-padded).
        per_row = 4 * tn * itemsize + 2 * 128 * 4
        cap = budget // per_row
        if cap >= N:
            return N  # full rows: always a legal block shape
        if cap < row_mult:
            return None
        tm = (cap // row_mult) * row_mult
        for d in n_divs:  # prefer an exact divisor unless it is much smaller
            if d <= cap:
                if 2 * d >= tm:
                    tm = d
                break
        return tm

    tm = tn = None
    for tn_c in tn_cands:
        tm_c = pick_tm(tn_c)
        if tm_c is not None:
            tm, tn = tm_c, tn_c
            break
    if tm is None:  # pathological tiny budget: minimal legal tile always fits
        tm, tn = min(N, row_mult), min(C, 128)

    # Megacore (v7x): give both TensorCores >= 2 balanced steps, but only if
    # the split keeps blocks >= ~4 MiB (the ~0.35 us/step overhead equals
    # ~1.1 MB of HBM traffic at 3.2 TB/s, so smaller blocks are overhead-bound).
    grid_cols = pl.cdiv(C, tn)
    total = pl.cdiv(N, tm) * grid_cols
    if total < 4 or total % 2:
        min_block = 4 << 20
        halves = {max(row_mult, ((tm >> k) // row_mult) * row_mult)
                  for k in range(1, 8)}
        cands = sorted({d for d in n_divs if d < tm} | halves, reverse=True)
        for t in cands:
            tot = pl.cdiv(N, t) * grid_cols
            if tot >= 4 and tot % 2 == 0 and t * tn * itemsize >= min_block:
                tm = t
                break
    return tm, tn


def cosface(logits, labels, *, s=64.0, m=0.4, block=None, vmem_budget_bytes=None):
    """CosFace logit adjustment.

    logits: [N, C] float array; labels: [N] int (-1 = ignore).
    Returns (logits - m * onehot(labels)) * s.  The output aliases the logits
    input, so callers that jit with donation get the module's in-place update.
    """
    N, C = logits.shape
    itemsize = jnp.dtype(logits.dtype).itemsize

    phys = _physical_vmem_bytes()
    if vmem_budget_bytes is None:
        # Generation-aware budget for the double-buffered working set:
        # ~44 MiB on v7x (64 MiB/TC), ~90 MiB on v5e/v6e (128 MiB/TC).
        vmem_budget_bytes = min(int(0.70 * phys), phys - (12 << 20))

    if block is None:
        tm, tn = _choose_tiles(N, C, itemsize, vmem_budget_bytes)
    else:
        tm, tn = block
        if not (tm == N or tm % 8 == 0) or not (tn == C or tn % 128 == 0):
            raise ValueError("block must be (8,128)-aligned or span the full dim")

    grid = (pl.cdiv(N, tm), pl.cdiv(C, tn))
    steps = grid[0] * grid[1]
    block_bytes = tm * tn * itemsize

    # Small-block fallback only: deepen input buffering to hide DMA issue
    # latency.  The main large-block path keeps default double buffering.
    use_b3 = block_bytes < (1 << 20) and steps > 8
    if use_b3:
        logits_spec = pl.BlockSpec((tm, tn), lambda i, j: (i, j),
                                   pipeline_mode=pl.Buffered(3))
    else:
        logits_spec = pl.BlockSpec((tm, tn), lambda i, j: (i, j))

    # Actual VMEM use: (2 or 3) input buffers + 2 output buffers + 2 labels
    # buffers, plus headroom for Mosaic internal scratch.  Clamp below physical.
    lbl_bytes = 2 * pl.cdiv(tm, 8) * 8 * 128 * 4
    used = (5 if use_b3 else 4) * block_bytes + lbl_bytes
    vmem_limit = min(max(used + (8 << 20), 32 << 20), phys - (4 << 20))
    if used + (2 << 20) > vmem_limit:
        raise ValueError(
            f"tiles ({tm},{tn}) need ~{used >> 20} MiB VMEM, over the "
            f"{vmem_limit >> 20} MiB limit for this chip")

    labels2d = labels.reshape(N, 1).astype(jnp.int32)
    kernel = functools.partial(_cosface_kernel, s=float(s), m=float(m))
    cost = pl.CostEstimate(
        flops=3 * N * C,
        transcendentals=0,
        bytes_accessed=2 * N * C * itemsize + N * 4,
    )
    return pl.pallas_call(
        kernel,
        out_shape=jax.ShapeDtypeStruct((N, C), logits.dtype),
        grid_spec=pltpu.PrefetchScalarGridSpec(
            num_scalar_prefetch=0,
            grid=grid,
            in_specs=[
                # labels: index_map constant in j -> fetched once per row tile.
                pl.BlockSpec((tm, 1), lambda i, j: (i, 0)),
                logits_spec,
            ],
            out_specs=pl.BlockSpec((tm, tn), lambda i, j: (i, j)),
        ),
        compiler_params=pltpu.CompilerParams(
            dimension_semantics=("parallel", "parallel"),
            vmem_limit_bytes=int(vmem_limit),
        ),
        # Mirror the PyTorch module's in-place write of `logits` (effective
        # when the caller donates the buffer under jit).
        input_output_aliases={1: 0},
        cost_estimate=cost,
    )(labels2d, logits)


def cosface_ref(logits, labels, *, s=64.0, m=0.4):
    """Pure-JAX reference with the same semantics as the PyTorch module."""
    C = logits.shape[1]
    one_hot = (jnp.arange(C)[None, :] == labels[:, None]) & (labels[:, None] != -1)
    return (logits - m * one_hot.astype(logits.dtype)) * s


if __name__ == "__main__":
    key = jax.random.PRNGKey(0)
    k1, k2, k3, k4, k5, k6, k7, k8 = jax.random.split(key, 8)

    # Test 1: auto-chosen tiles (single lane-dense full-row block at this size).
    N, C = 64, 512
    logits = jax.random.normal(k1, (N, C), dtype=jnp.float32)
    labels = jax.random.randint(k2, (N,), 0, C, dtype=jnp.int32)
    labels = labels.at[1].set(-1).at[5].set(-1).at[N - 1].set(-1)  # ignore rows
    ref = cosface_ref(logits, labels, s=64.0, m=0.4)
    out = jax.block_until_ready(cosface(logits, labels, s=64.0, m=0.4))
    assert jnp.allclose(out, ref, atol=1e-4, rtol=1e-5), "mismatch (auto tiles)"

    # Test 2: explicit multi-step grid -> exercises the column-shift path and
    # the small-block Buffered(3) fallback.
    logits2 = jax.random.normal(k3, (N, C), dtype=jnp.float32)
    labels2 = jax.random.randint(k4, (N,), 0, C, dtype=jnp.int32)
    labels2 = labels2.at[0].set(-1).at[7].set(-1)
    ref2 = cosface_ref(logits2, labels2, s=64.0, m=0.4)
    out2 = jax.block_until_ready(
        cosface(logits2, labels2, s=64.0, m=0.4, block=(16, 128)))
    assert jnp.allclose(out2, ref2, atol=1e-4, rtol=1e-5), "mismatch (tiled grid)"

    # Test 3: non-divisible N / C with explicit tiles -> cdiv grid, masked tails.
    N3, C3 = 37, 300
    logits3 = jax.random.normal(k5, (N3, C3), dtype=jnp.float32)
    labels3 = jax.random.randint(k6, (N3,), 0, C3, dtype=jnp.int32)
    labels3 = labels3.at[2].set(-1)
    ref3 = cosface_ref(logits3, labels3, s=64.0, m=0.4)
    out3 = jax.block_until_ready(
        cosface(logits3, labels3, s=64.0, m=0.4, block=(16, 128)))
    assert jnp.allclose(out3, ref3, atol=1e-4, rtol=1e-5), "mismatch (ragged tiled)"

    # Test 4: non-divisible N / C with auto tiles (full-dim block, odd sizes).
    out3b = jax.block_until_ready(cosface(logits3, labels3, s=64.0, m=0.4))
    assert jnp.allclose(out3b, ref3, atol=1e-4, rtol=1e-5), "mismatch (ragged auto)"

    # Test 5: bf16 path (dtype-aware row granularity; same rounding as reference).
    N5, C5 = 48, 256
    logits5 = jax.random.normal(k7, (N5, C5), dtype=jnp.bfloat16)
    labels5 = jax.random.randint(k8, (N5,), 0, C5, dtype=jnp.int32)
    labels5 = labels5.at[3].set(-1)
    ref5 = cosface_ref(logits5, labels5, s=64.0, m=0.4)
    out5 = jax.block_until_ready(cosface(logits5, labels5, s=64.0, m=0.4))
    assert jnp.allclose(out5.astype(jnp.float32), ref5.astype(jnp.float32),
                        atol=2e-1, rtol=2e-2), "mismatch (bf16)"

    print("KERNEL_OK")
</pallas_src>

<mosaic_0001>
module attributes {stable_mosaic.version = 11 : i64} {
  func.func @_cosface_kernel(%arg0: i32, %arg1: i32, %arg2: memref<64x1xi32, #tpu.memory_space<vmem>>, %arg3: memref<64x512xf32, #tpu.memory_space<vmem>>, %arg4: memref<64x512xf32, #tpu.memory_space<vmem>>) attributes {dimension_semantics = [#tpu.dimension_semantics<parallel>, #tpu.dimension_semantics<parallel>], iteration_bounds = array<i64: 1, 1>, scalar_prefetch = 0 : i64, scratch_operands = 0 : i64, tpu.core_type = #tpu.core_type<tc>, window_params = [{transform_indices = @transform_0, window_bounds = array<i64: 64, 1>}, {transform_indices = @transform_1, window_bounds = array<i64: 64, 512>}, {transform_indices = @transform_2, window_bounds = array<i64: 64, 512>}]} {
    %c0 = arith.constant 0 : index
    %c0_0 = arith.constant 0 : index
    %0 = vector.load %arg3[%c0, %c0_0] : memref<64x512xf32, #tpu.memory_space<vmem>>, vector<64x512xf32>
    %c0_1 = arith.constant 0 : index
    %c0_2 = arith.constant 0 : index
    %1 = vector.load %arg2[%c0_1, %c0_2] : memref<64x1xi32, #tpu.memory_space<vmem>>, vector<64x1xi32>
    %c512_i32 = arith.constant 512 : i32
    %2 = arith.muli %arg1, %c512_i32 : i32
    %3 = vector.broadcast %2 : i32 to vector<64x1xi32>
    %4 = arith.subi %1, %3 : vector<64x1xi32>
    %5 = tpu.iota {dimensions = array<i32: 1>} : vector<64x512xi32>
    %6 = vector.broadcast %4 : vector<64x1xi32> to vector<64x512xi32>
    %7 = arith.cmpi eq, %5, %6 : vector<64x512xi32>
    %cst = arith.constant 4.000000e-01 : f32
    %cst_3 = arith.constant 0.000000e+00 : f32
    %8 = vector.broadcast %cst : f32 to vector<64x512xf32>
    %9 = vector.broadcast %cst_3 : f32 to vector<64x512xf32>
    %10 = arith.select %7, %8, %9 : vector<64x512xi1>, vector<64x512xf32>
    %11 = arith.subf %0, %10 : vector<64x512xf32>
    %cst_4 = arith.constant 6.400000e+01 : f32
    %12 = vector.broadcast %cst_4 : f32 to vector<64x512xf32>
    %13 = arith.mulf %11, %12 : vector<64x512xf32>
    %c0_5 = arith.constant 0 : index
    %c0_6 = arith.constant 0 : index
    %14 = vector.load %arg4[%c0_5, %c0_6] : memref<64x512xf32, #tpu.memory_space<vmem>>, vector<64x512xf32>
    tpu.vector_store %arg4[%c0_5, %c0_6], %13 {strides = array<i32>} : memref<64x512xf32, #tpu.memory_space<vmem>>, vector<64x512xf32>,
    return
  }
  func.func @transform_0(%arg0: i32, %arg1: i32) -> (i32, i32) {
    %c0_i32 = arith.constant 0 : i32
    %c0_i32_0 = arith.constant 0 : i32
    return %arg0, %c0_i32 : i32, i32
  }
  func.func @transform_1(%arg0: i32, %arg1: i32) -> (i32, i32) {
    %c0_i32 = arith.constant 0 : i32
    return %arg0, %arg1 : i32, i32
  }
  func.func @transform_2(%arg0: i32, %arg1: i32) -> (i32, i32) {
    %c0_i32 = arith.constant 0 : i32
    return %arg0, %arg1 : i32, i32
  }
}

</mosaic_0001>

<llo_original>
// kernel: tpu_custom_call.1
$region0: #{tpu_custom_call.1}
  #allocation0 [shape = 'u32[]', space=smem, size = 0x4, offset = 0x4, fixed_abs, tag = 'smem constant byte address 0x4 - core index']
  #allocation1 [shape = 'u32[144,128]{1,0:T(1,128)}', space=vmem, size = 0x12000, scoped, tag = 'internal scratch']
  %s0 = inlined_call_operand.vmem [shape: s32[64,1], index: 0, kind: input, shape index: {}]
  %s1 = inlined_call_operand.hbm [shape: f32[64,512], index: 1, kind: input, shape index: {}, may-alias: {1,2}]
  %s2 = inlined_call_operand.hbm [shape: f32[64,512], index: 2, kind: output, shape index: {}, may-alias: {1,2}]
  %s3 = sld [smem:[#allocation0]]
  $region22: #{tpu_custom_call.1} parent=0
    _
  %s5 = ssub.s32 1, %s3
  %s6 = scalar_select 0, %s5, %s3
  $region1: #{tpu_custom_call.1} parent=0
    #allocation2 [shape = 'u8[131072]{0}', space=vmem, size = 0x20000, scoped, tag = 'input window, operand 1, single buffered']
    #allocation3 [shape = 's32[1]{0}', space=sflag, size = 0x4, scoped, tag = 'scoped memory for tpu_custom_call.1']
    #allocation4 [shape = 's32[1]{0}', space=sflag, size = 0x4, scoped, tag = 'scoped memory for tpu_custom_call.1']
    #allocation5 [shape = 'u8[131072]{0}', space=vmem, size = 0x20000, scoped, tag = 'output window, operand 0, single buffered']
    %7 = vsyncpa [#allocation3], 0
    %8 = vsyncpa [#allocation4], 0
    // Predicated region
    $region2: #{tpu_custom_call.1} parent=1 // pred_check
      _
    $region3: #{tpu_custom_call.1} parent=1 // pred_check_branch
      %10 = sbr.rel (0) target = $region5
    $region4: #{tpu_custom_call.1} parent=1 // pred_region
      _
    $region5: #{tpu_custom_call.1} parent=1 // pred_fallthru
      _
    // Predicated region
    $region6: #{tpu_custom_call.1} parent=1 // pred_check
      _
    $region7: #{tpu_custom_call.1} parent=1 // pred_check_branch
      %12 = sbr.rel (0) target = $region9
    $region8: #{tpu_custom_call.1} parent=1 // pred_region
      %s14 = ssub.s32 4096, 4096
      %15 = vsyncadd [#allocation3], %s14
      %s16 = sshll.u32 [#allocation2], 4
      %s17 = int_to_ptr.vmem [resolvable:$true] %s16
      %22 = dma.hbm_to_vmem [thread:$0]  %s1, 4096, %s17, [#allocation3], 512, 512, 32
    $region9: #{tpu_custom_call.1} parent=1 // pred_fallthru
      _
    // Predicated region
    $region10: #{tpu_custom_call.1} parent=1 // pred_check
      _
    $region11: #{tpu_custom_call.1} parent=1 // pred_check_branch
      %24 = sbr.rel (0) target = $region13
    $region12: #{tpu_custom_call.1} parent=1 // pred_region
      %25 = dma.done [#allocation3], 4096
    $region13: #{tpu_custom_call.1} parent=1 // pred_fallthru
      _
    %v26 = vld [vmem:[#allocation2] sm:$0xff]
    %v27 = vld [vmem:[#allocation2 + $0x8] sm:$0xff]
    %v28 = vld [vmem:[#allocation2 + $0x10] sm:$0xff]
    %v29 = vld [vmem:[#allocation2 + $0x18] sm:$0xff]
    %v30 = vld [vmem:[#allocation2 + $0x20] sm:$0xff]
    %v31 = vld [vmem:[#allocation2 + $0x28] sm:$0xff]
    %v32 = vld [vmem:[#allocation2 + $0x30] sm:$0xff]
    %v33 = vld [vmem:[#allocation2 + $0x38] sm:$0xff]
    %v34 = vld [vmem:[#allocation2 + $0x40] sm:$0xff]
    %v35 = vld [vmem:[#allocation2 + $0x48] sm:$0xff]
    %v36 = vld [vmem:[#allocation2 + $0x50] sm:$0xff]
    %v37 = vld [vmem:[#allocation2 + $0x58] sm:$0xff]
    %v38 = vld [vmem:[#allocation2 + $0x60] sm:$0xff]
    %v39 = vld [vmem:[#allocation2 + $0x68] sm:$0xff]
    %v40 = vld [vmem:[#allocation2 + $0x70] sm:$0xff]
    %v41 = vld [vmem:[#allocation2 + $0x78] sm:$0xff]
    %v42 = vld [vmem:[#allocation2 + $0x80] sm:$0xff]
    %v43 = vld [vmem:[#allocation2 + $0x88] sm:$0xff]
    %v44 = vld [vmem:[#allocation2 + $0x90] sm:$0xff]
    %v45 = vld [vmem:[#allocation2 + $0x98] sm:$0xff]
    %v46 = vld [vmem:[#allocation2 + $0xa0] sm:$0xff]
    %v47 = vld [vmem:[#allocation2 + $0xa8] sm:$0xff]
    %v48 = vld [vmem:[#allocation2 + $0xb0] sm:$0xff]
    %v49 = vld [vmem:[#allocation2 + $0xb8] sm:$0xff]
    %v50 = vld [vmem:[#allocation2 + $0xc0] sm:$0xff]
    %v51 = vld [vmem:[#allocation2 + $0xc8] sm:$0xff]
    %v52 = vld [vmem:[#allocation2 + $0xd0] sm:$0xff]
    %v53 = vld [vmem:[#allocation2 + $0xd8] sm:$0xff]
    %v54 = vld [vmem:[#allocation2 + $0xe0] sm:$0xff]
    %v55 = vld [vmem:[#allocation2 + $0xe8] sm:$0xff]
    %v56 = vld [vmem:[#allocation2 + $0xf0] sm:$0xff]
    %v57 = vld [vmem:[#allocation2 + $0xf8] sm:$0xff]
    %v58 = vld [vmem:[%s0] sm:$0xff]
    %v59 = vld [vmem:[%s0 + $0x8] sm:$0xff]
    %v60 = vld [vmem:[%s0 + $0x10] sm:$0xff]
    %v61 = vld [vmem:[%s0 + $0x18] sm:$0xff]
    %v62 = vld [vmem:[%s0 + $0x20] sm:$0xff]
    %v63 = vld [vmem:[%s0 + $0x28] sm:$0xff]
    %v64 = vld [vmem:[%s0 + $0x30] sm:$0xff]
    %v65 = vld [vmem:[%s0 + $0x38] sm:$0xff]
    %s66 = smul.u32 0, 512
    %v67 = vstv %s66
    %v68 = vsub.s32 %v58, %v67
    %v69 = vsub.s32 %v59, %v67
    %v70 = vsub.s32 %v60, %v67
    %v71 = vsub.s32 %v61, %v67
    %v72 = vsub.s32 %v62, %v67
    %v73 = vsub.s32 %v63, %v67
    %v74 = vsub.s32 %v64, %v67
    %v75 = vsub.s32 %v65, %v67
    %v76 = vlaneseq
    %v77 = vand.u32 %v76, 127
    %v78 = vadd.s32 %v77, 128
    %v79 = vadd.s32 %v77, 256
    %v80 = vadd.s32 %v77, 384
    %81 = vset.pattern.permute.xlu0 0
    %82 = vperm.xlu0 %81, %v68
    %v83 = vpop.permute.xlu0 %82
    %84 = vset.pattern.permute.xlu0 0
    %85 = vperm.xlu0 %84, %v69
    %v86 = vpop.permute.xlu0 %85
    %87 = vset.pattern.permute.xlu0 0
    %88 = vperm.xlu0 %87, %v70
    %v89 = vpop.permute.xlu0 %88
    %90 = vset.pattern.permute.xlu0 0
    %91 = vperm.xlu0 %90, %v71
    %v92 = vpop.permute.xlu0 %91
    %93 = vset.pattern.permute.xlu0 0
    %94 = vperm.xlu0 %93, %v72
    %v95 = vpop.permute.xlu0 %94
    %96 = vset.pattern.permute.xlu0 0
    %97 = vperm.xlu0 %96, %v73
    %v98 = vpop.permute.xlu0 %97
    %99 = vset.pattern.permute.xlu0 0
    %100 = vperm.xlu0 %99, %v74
    %v101 = vpop.permute.xlu0 %100
    %102 = vset.pattern.permute.xlu0 0
    %103 = vperm.xlu0 %102, %v75
    %v104 = vpop.permute.xlu0 %103
    %vm105 = vcmp.eq.s32.totalorder %v77, %v83
    %vm106 = vcmp.eq.s32.totalorder %v78, %v83
    %vm107 = vcmp.eq.s32.totalorder %v79, %v83
    %vm108 = vcmp.eq.s32.totalorder %v80, %v83
    %vm109 = vcmp.eq.s32.totalorder %v77, %v86
    %vm110 = vcmp.eq.s32.totalorder %v78, %v86
    %vm111 = vcmp.eq.s32.totalorder %v79, %v86
    %vm112 = vcmp.eq.s32.totalorder %v80, %v86
    %vm113 = vcmp.eq.s32.totalorder %v77, %v89
    %vm114 = vcmp.eq.s32.totalorder %v78, %v89
    %vm115 = vcmp.eq.s32.totalorder %v79, %v89
    %vm116 = vcmp.eq.s32.totalorder %v80, %v89
    %vm117 = vcmp.eq.s32.totalorder %v77, %v92
    %vm118 = vcmp.eq.s32.totalorder %v78, %v92
    %vm119 = vcmp.eq.s32.totalorder %v79, %v92
    %vm120 = vcmp.eq.s32.totalorder %v80, %v92
    %vm121 = vcmp.eq.s32.totalorder %v77, %v95
    %vm122 = vcmp.eq.s32.totalorder %v78, %v95
    %vm123 = vcmp.eq.s32.totalorder %v79, %v95
    %vm124 = vcmp.eq.s32.totalorder %v80, %v95
    %vm125 = vcmp.eq.s32.totalorder %v77, %v98
    %vm126 = vcmp.eq.s32.totalorder %v78, %v98
    %vm127 = vcmp.eq.s32.totalorder %v79, %v98
    %vm128 = vcmp.eq.s32.totalorder %v80, %v98
    %vm129 = vcmp.eq.s32.totalorder %v77, %v101
    %vm130 = vcmp.eq.s32.totalorder %v78, %v101
    %vm131 = vcmp.eq.s32.totalorder %v79, %v101
    %vm132 = vcmp.eq.s32.totalorder %v80, %v101
    %vm133 = vcmp.eq.s32.totalorder %v77, %v104
    %vm134 = vcmp.eq.s32.totalorder %v78, %v104
    %vm135 = vcmp.eq.s32.totalorder %v79, %v104
    %vm136 = vcmp.eq.s32.totalorder %v80, %v104
    %v137 = vsel %vm105, 0.4, 0.0
    %v138 = vsel %vm106, 0.4, 0.0
    %v139 = vsel %vm107, 0.4, 0.0
    %v140 = vsel %vm108, 0.4, 0.0
    %v141 = vsel %vm109, 0.4, 0.0
    %v142 = vsel %vm110, 0.4, 0.0
    %v143 = vsel %vm111, 0.4, 0.0
    %v144 = vsel %vm112, 0.4, 0.0
    %v145 = vsel %vm113, 0.4, 0.0
    %v146 = vsel %vm114, 0.4, 0.0
    %v147 = vsel %vm115, 0.4, 0.0
    %v148 = vsel %vm116, 0.4, 0.0
    %v149 = vsel %vm117, 0.4, 0.0
    %v150 = vsel %vm118, 0.4, 0.0
    %v151 = vsel %vm119, 0.4, 0.0
    %v152 = vsel %vm120, 0.4, 0.0
    %v153 = vsel %vm121, 0.4, 0.0
    %v154 = vsel %vm122, 0.4, 0.0
    %v155 = vsel %vm123, 0.4, 0.0
    %v156 = vsel %vm124, 0.4, 0.0
    %v157 = vsel %vm125, 0.4, 0.0
    %v158 = vsel %vm126, 0.4, 0.0
    %v159 = vsel %vm127, 0.4, 0.0
    %v160 = vsel %vm128, 0.4, 0.0
    %v161 = vsel %vm129, 0.4, 0.0
    %v162 = vsel %vm130, 0.4, 0.0
    %v163 = vsel %vm131, 0.4, 0.0
    %v164 = vsel %vm132, 0.4, 0.0
    %v165 = vsel %vm133, 0.4, 0.0
    %v166 = vsel %vm134, 0.4, 0.0
    %v167 = vsel %vm135, 0.4, 0.0
    %v168 = vsel %vm136, 0.4, 0.0
    %v169 = vsub.f32 %v26, %v137
    %v170 = vsub.f32 %v27, %v138
    %v171 = vsub.f32 %v28, %v139
    %v172 = vsub.f32 %v29, %v140
    %v173 = vsub.f32 %v30, %v141
    %v174 = vsub.f32 %v31, %v142
    %v175 = vsub.f32 %v32, %v143
    %v176 = vsub.f32 %v33, %v144
    %v177 = vsub.f32 %v34, %v145
    %v178 = vsub.f32 %v35, %v146
    %v179 = vsub.f32 %v36, %v147
    %v180 = vsub.f32 %v37, %v148
    %v181 = vsub.f32 %v38, %v149
    %v182 = vsub.f32 %v39, %v150
    %v183 = vsub.f32 %v40, %v151
    %v184 = vsub.f32 %v41, %v152
    %v185 = vsub.f32 %v42, %v153
    %v186 = vsub.f32 %v43, %v154
    %v187 = vsub.f32 %v44, %v155
    %v188 = vsub.f32 %v45, %v156
    %v189 = vsub.f32 %v46, %v157
    %v190 = vsub.f32 %v47, %v158
    %v191 = vsub.f32 %v48, %v159
    %v192 = vsub.f32 %v49, %v160
    %v193 = vsub.f32 %v50, %v161
    %v194 = vsub.f32 %v51, %v162
    %v195 = vsub.f32 %v52, %v163
    %v196 = vsub.f32 %v53, %v164
    %v197 = vsub.f32 %v54, %v165
    %v198 = vsub.f32 %v55, %v166
    %v199 = vsub.f32 %v56, %v167
    %v200 = vsub.f32 %v57, %v168
    %v201 = vmul.f32 %v169, 64.0
    %v202 = vmul.f32 %v170, 64.0
    %v203 = vmul.f32 %v171, 64.0
    %v204 = vmul.f32 %v172, 64.0
    %v205 = vmul.f32 %v173, 64.0
    %v206 = vmul.f32 %v174, 64.0
    %v207 = vmul.f32 %v175, 64.0
    %v208 = vmul.f32 %v176, 64.0
    %v209 = vmul.f32 %v177, 64.0
    %v210 = vmul.f32 %v178, 64.0
    %v211 = vmul.f32 %v179, 64.0
    %v212 = vmul.f32 %v180, 64.0
    %v213 = vmul.f32 %v181, 64.0
    %v214 = vmul.f32 %v182, 64.0
    %v215 = vmul.f32 %v183, 64.0
    %v216 = vmul.f32 %v184, 64.0
    %v217 = vmul.f32 %v185, 64.0
    %v218 = vmul.f32 %v186, 64.0
    %v219 = vmul.f32 %v187, 64.0
    %v220 = vmul.f32 %v188, 64.0
    %v221 = vmul.f32 %v189, 64.0
    %v222 = vmul.f32 %v190, 64.0
    %v223 = vmul.f32 %v191, 64.0
    %v224 = vmul.f32 %v192, 64.0
    %v225 = vmul.f32 %v193, 64.0
    %v226 = vmul.f32 %v194, 64.0
    %v227 = vmul.f32 %v195, 64.0
    %v228 = vmul.f32 %v196, 64.0
    %v229 = vmul.f32 %v197, 64.0
    %v230 = vmul.f32 %v198, 64.0
    %v231 = vmul.f32 %v199, 64.0
    %v232 = vmul.f32 %v200, 64.0
    %233 = vst [vmem:[#allocation5] sm:$0xff] %v201
    %234 = vst [vmem:[#allocation5 + $0x8] sm:$0xff] %v202
    %235 = vst [vmem:[#allocation5 + $0x10] sm:$0xff] %v203
    %236 = vst [vmem:[#allocation5 + $0x18] sm:$0xff] %v204
    %237 = vst [vmem:[#allocation5 + $0x20] sm:$0xff] %v205
    %238 = vst [vmem:[#allocation5 + $0x28] sm:$0xff] %v206
    %239 = vst [vmem:[#allocation5 + $0x30] sm:$0xff] %v207
    %240 = vst [vmem:[#allocation5 + $0x38] sm:$0xff] %v208
    %241 = vst [vmem:[#allocation5 + $0x40] sm:$0xff] %v209
    %242 = vst [vmem:[#allocation5 + $0x48] sm:$0xff] %v210
    %243 = vst [vmem:[#allocation5 + $0x50] sm:$0xff] %v211
    %244 = vst [vmem:[#allocation5 + $0x58] sm:$0xff] %v212
    %245 = vst [vmem:[#allocation5 + $0x60] sm:$0xff] %v213
    %246 = vst [vmem:[#allocation5 + $0x68] sm:$0xff] %v214
    %247 = vst [vmem:[#allocation5 + $0x70] sm:$0xff] %v215
    %248 = vst [vmem:[#allocation5 + $0x78] sm:$0xff] %v216
    %249 = vst [vmem:[#allocation5 + $0x80] sm:$0xff] %v217
    %250 = vst [vmem:[#allocation5 + $0x88] sm:$0xff] %v218
    %251 = vst [vmem:[#allocation5 + $0x90] sm:$0xff] %v219
    %252 = vst [vmem:[#allocation5 + $0x98] sm:$0xff] %v220
    %253 = vst [vmem:[#allocation5 + $0xa0] sm:$0xff] %v221
    %254 = vst [vmem:[#allocation5 + $0xa8] sm:$0xff] %v222
    %255 = vst [vmem:[#allocation5 + $0xb0] sm:$0xff] %v223
    %256 = vst [vmem:[#allocation5 + $0xb8] sm:$0xff] %v224
    %257 = vst [vmem:[#allocation5 + $0xc0] sm:$0xff] %v225
    %258 = vst [vmem:[#allocation5 + $0xc8] sm:$0xff] %v226
    %259 = vst [vmem:[#allocation5 + $0xd0] sm:$0xff] %v227
    %260 = vst [vmem:[#allocation5 + $0xd8] sm:$0xff] %v228
    %261 = vst [vmem:[#allocation5 + $0xe0] sm:$0xff] %v229
    %262 = vst [vmem:[#allocation5 + $0xe8] sm:$0xff] %v230
    %263 = vst [vmem:[#allocation5 + $0xf0] sm:$0xff] %v231
    %264 = vst [vmem:[#allocation5 + $0xf8] sm:$0xff] %v232
    // Predicated region
    $region14: #{tpu_custom_call.1} parent=1 // pred_check
      _
    $region15: #{tpu_custom_call.1} parent=1 // pred_check_branch
      %266 = sbr.rel (0) target = $region17
    $region16: #{tpu_custom_call.1} parent=1 // pred_region
      %s268 = ssub.s32 4096, 4096
      %269 = vsyncadd [#allocation4], %s268
      %s270 = sshll.u32 [#allocation5], 4
      %s271 = int_to_ptr.vmem [resolvable:$true] %s270
      %276 = dma.vmem_to_hbm [thread:$0]  %s271, 4096, %s2, [#allocation4], 512, 512, 32
    $region17: #{tpu_custom_call.1} parent=1 // pred_fallthru
      _
    // Predicated region
    $region18: #{tpu_custom_call.1} parent=1 // pred_check
      _
    $region19: #{tpu_custom_call.1} parent=1 // pred_check_branch
      %278 = sbr.rel (0) target = $region21
    $region20: #{tpu_custom_call.1} parent=1 // pred_region
      %279 = dma.done [#allocation4], 4096
    $region21: #{tpu_custom_call.1} parent=1 // pred_fallthru
      _
    %280 = vsyncpa [#allocation3], 1
    %281 = vsyncpa [#allocation4], 1

</llo_original>
